<compile_context>
chip_gen: v6e
topology: v6e:2x2x1
jax: 0.10.0
libtpu: 0.0.40
codegen_flags: <defaults>
</compile_context>

<pallas_src>
import functools

import jax
import jax.numpy as jnp
from jax.experimental import pallas as pl
from jax.experimental.pallas import tpu as pltpu


def _block_mask_kernel(mask_ref, bm_ref, cnt_ref, pad_ref, *, block_size, H, W):
    # mask_ref: (1, H, W) f32 Bernoulli drop-center mask for one image
    # bm_ref:   (1, H, W) bf16 keep mask (1 - stride-1 max pool)
    # cnt_ref:  (1, 1, 1) f32 number of kept positions in this image
    # pad_ref:  (Hp, Wp)  f32 VMEM scratch holding the zero-padded mask
    p = block_size // 2
    pad_ref[...] = jnp.zeros_like(pad_ref)
    pad_ref[p:p + H, p:p + W] = mask_ref[0]
    mp = pad_ref[...]

    # Separable stride-1 max pool: rows (sublane shifts) then cols (lane shifts).
    rowmax = mp[0:H, :]
    for dy in range(1, block_size):
        rowmax = jnp.maximum(rowmax, mp[dy:dy + H, :])
    pooled = rowmax[:, 0:W]
    for dx in range(1, block_size):
        pooled = jnp.maximum(pooled, rowmax[:, dx:dx + W])

    keep = 1.0 - pooled                       # (H, W) f32, values in {0, 1}
    bm_ref[0] = keep.astype(bm_ref.dtype)     # exact in bf16
    cnt_ref[0] = jnp.sum(keep, keepdims=True)


def _apply_kernel(scale_ref, x_ref, bm_ref, o_ref):
    # scale_ref: (1,) f32 in SMEM
    # x_ref/o_ref: (1, C_tile, H*W) lane-dense tiles;  bm_ref: (1, 1, H*W) bf16
    scale = scale_ref[0]
    bm = bm_ref[...].astype(jnp.float32)
    out = x_ref[...].astype(jnp.float32) * bm * scale
    o_ref[...] = out.astype(o_ref.dtype)


def _choose_c_tile(C, HW, itemsize, target_bytes=2 * 1024 * 1024):
    # Divisors of C that satisfy the sublane constraint (multiple of 8 or the
    # full C extent); pick the largest tile under the ~2 MB budget, otherwise
    # the smallest valid one (keeps v7x's 64 MiB VMEM comfortable).
    cands = [d for d in range(1, C + 1) if C % d == 0 and (d == C or d % 8 == 0)]
    fitting = [d for d in cands if d * HW * itemsize <= target_bytes]
    return max(fitting) if fitting else min(cands)


def dropblock2d(x, key, drop_prob, block_size, training=True):
    assert x.ndim == 4, "Expected (N, C, H, W)"
    if (not training) or drop_prob == 0.0:
        return x

    N, C, H, W = x.shape
    HW = H * W
    gamma = drop_prob / (block_size ** 2)
    Hp = H + block_size - 1
    Wp = W + block_size - 1

    # Bernoulli drop-center mask (same RNG stream as the pure-JAX reference).
    # TODO(synk): generate in-kernel with pltpu.prng_seed/prng_random_bits to
    # drop this HLO and one small HBM round-trip.
    mask = (jax.random.uniform(key, (N, H, W)) < gamma).astype(jnp.float32)

    # Kernel 1: per-image padded separable max pool -> keep mask + keep count.
    block_mask, keep_cnt = pl.pallas_call(
        functools.partial(_block_mask_kernel, block_size=block_size, H=H, W=W),
        out_shape=(
            jax.ShapeDtypeStruct((N, H, W), jnp.bfloat16),
            jax.ShapeDtypeStruct((N, 1, 1), jnp.float32),
        ),
        grid=(N,),
        in_specs=[pl.BlockSpec((1, H, W), lambda n: (n, 0, 0))],
        out_specs=(
            pl.BlockSpec((1, H, W), lambda n: (n, 0, 0)),
            pl.BlockSpec((1, 1, 1), lambda n: (n, 0, 0)),
        ),
        scratch_shapes=[pltpu.VMEM((Hp, Wp), jnp.float32)],
        compiler_params=pltpu.CompilerParams(
            dimension_semantics=("parallel",)),
    )(mask)

    # Global normalization factor (N scalars -> 1 scalar; no re-read of the
    # full block_mask).  Like PyTorch, this is inf if every position drops.
    total_keep = jnp.sum(keep_cnt)
    scale = (jnp.asarray(N * H * W, jnp.float32) / total_keep).reshape(1)

    # Kernel 2: lane-dense elementwise apply over (N, C, H*W).
    itemsize = jnp.dtype(x.dtype).itemsize
    c_tile = _choose_c_tile(C, HW, itemsize)
    n_c_tiles = C // c_tile

    x3 = x.reshape(N, C, HW)                 # contiguous reshapes: free in XLA
    bm3 = block_mask.reshape(N, 1, HW)

    # double-buffered in/out tiles + mask tiles, with headroom; capped at the
    # default scoped limit so it is valid on v5e/v6e/v7x alike.
    tile_bytes = c_tile * HW * itemsize
    vmem_limit = int(min(max(4 * tile_bytes + 4 * HW * 2 + (1 << 20), 8 << 20),
                         32 << 20))

    out3 = pl.pallas_call(
        _apply_kernel,
        out_shape=jax.ShapeDtypeStruct((N, C, HW), x.dtype),
        grid=(N, n_c_tiles),
        in_specs=[
            pl.BlockSpec(memory_space=pltpu.MemorySpace.SMEM),        # scale
            pl.BlockSpec((1, c_tile, HW), lambda n, c: (n, c, 0)),    # x
            pl.BlockSpec((1, 1, HW), lambda n, c: (n, 0, 0)),         # mask
        ],
        out_specs=pl.BlockSpec((1, c_tile, HW), lambda n, c: (n, c, 0)),
        compiler_params=pltpu.CompilerParams(
            dimension_semantics=("parallel", "parallel"),
            vmem_limit_bytes=vmem_limit),
    )(scale, x3, bm3)
    return out3.reshape(N, C, H, W)


def dropblock2d_ref(x, key, drop_prob, block_size):
    # Pure-JAX reference (same RNG stream as the Pallas path).
    N, C, H, W = x.shape
    gamma = drop_prob / (block_size ** 2)
    mask = (jax.random.uniform(key, (N, H, W)) < gamma).astype(jnp.float32)
    p = block_size // 2
    q = block_size - 1 - p
    mp = jnp.pad(mask, ((0, 0), (p, q), (p, q)))
    pooled = jnp.zeros((N, H, W), jnp.float32)
    for dy in range(block_size):
        for dx in range(block_size):
            pooled = jnp.maximum(pooled, mp[:, dy:dy + H, dx:dx + W])
    bm = 1.0 - pooled
    scale = bm.size / jnp.sum(bm)
    out = x.astype(jnp.float32) * bm[:, None, :, :] * scale
    return out.astype(x.dtype)


if __name__ == "__main__":
    key = jax.random.PRNGKey(0)
    kx, k1, k2 = jax.random.split(key, 3)
    x = jax.random.normal(kx, (2, 4, 16, 16), dtype=jnp.float32)

    # Odd block size.
    out = jax.block_until_ready(dropblock2d(x, k1, 0.3, 3, training=True))
    ref = dropblock2d_ref(x, k1, 0.3, 3)
    assert out.shape == x.shape and out.dtype == x.dtype
    assert jnp.allclose(out, ref, atol=1e-5, rtol=1e-5), "mismatch (bs=3)"

    # Even block size (exercises the pad-offset folding of the [:-1,:-1] crop).
    out4 = jax.block_until_ready(dropblock2d(x, k2, 0.4, 4, training=True))
    ref4 = dropblock2d_ref(x, k2, 0.4, 4)
    assert jnp.allclose(out4, ref4, atol=1e-5, rtol=1e-5), "mismatch (bs=4)"

    # bf16 input exercises the explicit output-dtype cast in the apply kernel.
    xb = x.astype(jnp.bfloat16)
    outb = jax.block_until_ready(dropblock2d(xb, k1, 0.3, 3, training=True))
    refb = dropblock2d_ref(xb, k1, 0.3, 3)
    assert outb.dtype == jnp.bfloat16
    assert jnp.allclose(outb.astype(jnp.float32), refb.astype(jnp.float32),
                        atol=5e-2, rtol=5e-2), "mismatch (bf16)"

    # Eval / drop_prob == 0 path is identity, as in PyTorch.
    assert jnp.array_equal(dropblock2d(x, k1, 0.3, 3, training=False), x)
    assert jnp.array_equal(dropblock2d(x, k1, 0.0, 3, training=True), x)

    print("KERNEL_OK")
</pallas_src>

<mosaic_0001>
module attributes {stable_mosaic.version = 11 : i64} {
  func.func @_block_mask_kernel(%arg0: i32, %arg1: memref<1x16x16xf32, #tpu.memory_space<vmem>>, %arg2: memref<1x16x16xbf16, #tpu.memory_space<vmem>>, %arg3: memref<1x1x1xf32, #tpu.memory_space<vmem>>, %arg4: memref<18x18xf32, #tpu.memory_space<vmem>>) attributes {dimension_semantics = [#tpu.dimension_semantics<parallel>], iteration_bounds = array<i64: 2>, scalar_prefetch = 0 : i64, scratch_operands = 1 : i64, tpu.core_type = #tpu.core_type<tc>, window_params = [{transform_indices = @transform_0, window_bounds = array<i64: 1, 16, 16>}, {transform_indices = @transform_1, window_bounds = array<i64: 1, 16, 16>}, {transform_indices = @transform_2, window_bounds = array<i64: 1, 1, 1>}]} {
    %cst = arith.constant 0.000000e+00 : f32
    %0 = vector.broadcast %cst : f32 to vector<18x18xf32>
    %c0 = arith.constant 0 : index
    %c0_0 = arith.constant 0 : index
    %1 = vector.load %arg4[%c0, %c0_0] : memref<18x18xf32, #tpu.memory_space<vmem>>, vector<18x18xf32>
    tpu.vector_store %arg4[%c0, %c0_0], %0 {strides = array<i32>} : memref<18x18xf32, #tpu.memory_space<vmem>>, vector<18x18xf32>,
    %c0_1 = arith.constant 0 : index
    %c0_2 = arith.constant 0 : index
    %c0_3 = arith.constant 0 : index
    %2 = vector.load %arg1[%c0_1, %c0_2, %c0_3] : memref<1x16x16xf32, #tpu.memory_space<vmem>>, vector<1x16x16xf32>
    %3 = vector.shape_cast %2 : vector<1x16x16xf32> to vector<16x16xf32>
    %c1 = arith.constant 1 : index
    %c1_4 = arith.constant 1 : index
    %4 = vector.load %arg4[%c1, %c1_4] : memref<18x18xf32, #tpu.memory_space<vmem>>, vector<16x16xf32>
    tpu.vector_store %arg4[%c1, %c1_4], %3 {strides = array<i32>} : memref<18x18xf32, #tpu.memory_space<vmem>>, vector<16x16xf32>,
    %c0_5 = arith.constant 0 : index
    %c0_6 = arith.constant 0 : index
    %5 = vector.load %arg4[%c0_5, %c0_6] : memref<18x18xf32, #tpu.memory_space<vmem>>, vector<18x18xf32>
    %6 = vector.extract_strided_slice %5 {offsets = [0, 0], sizes = [16, 18], strides = [1, 1]} : vector<18x18xf32> to vector<16x18xf32>
    %7 = vector.extract_strided_slice %5 {offsets = [1, 0], sizes = [16, 18], strides = [1, 1]} : vector<18x18xf32> to vector<16x18xf32>
    %8 = arith.maximumf %6, %7 : vector<16x18xf32>
    %9 = vector.extract_strided_slice %5 {offsets = [2, 0], sizes = [16, 18], strides = [1, 1]} : vector<18x18xf32> to vector<16x18xf32>
    %10 = arith.maximumf %8, %9 : vector<16x18xf32>
    %11 = vector.extract_strided_slice %10 {offsets = [0, 0], sizes = [16, 16], strides = [1, 1]} : vector<16x18xf32> to vector<16x16xf32>
    %12 = vector.extract_strided_slice %10 {offsets = [0, 1], sizes = [16, 16], strides = [1, 1]} : vector<16x18xf32> to vector<16x16xf32>
    %13 = arith.maximumf %11, %12 : vector<16x16xf32>
    %14 = vector.extract_strided_slice %10 {offsets = [0, 2], sizes = [16, 16], strides = [1, 1]} : vector<16x18xf32> to vector<16x16xf32>
    %15 = arith.maximumf %13, %14 : vector<16x16xf32>
    %cst_7 = arith.constant 1.000000e+00 : f32
    %16 = vector.broadcast %cst_7 : f32 to vector<16x16xf32>
    %17 = arith.subf %16, %15 : vector<16x16xf32>
    %18 = arith.truncf %17 : vector<16x16xf32> to vector<16x16xbf16>
    %c0_8 = arith.constant 0 : index
    %c0_9 = arith.constant 0 : index
    %c0_10 = arith.constant 0 : index
    %19 = vector.load %arg2[%c0_8, %c0_9, %c0_10] : memref<1x16x16xbf16, #tpu.memory_space<vmem>>, vector<1x16x16xbf16>
    %20 = vector.shape_cast %19 : vector<1x16x16xbf16> to vector<16x16xbf16>
    %21 = vector.shape_cast %18 : vector<16x16xbf16> to vector<1x16x16xbf16>
    tpu.vector_store %arg2[%c0_8, %c0_9, %c0_10], %21 {strides = array<i32>} : memref<1x16x16xbf16, #tpu.memory_space<vmem>>, vector<1x16x16xbf16>,
    %22 = vector.shape_cast %17 : vector<16x16xf32> to vector<1x16x16xf32>
    %cst_11 = arith.constant dense<0.000000e+00> : vector<1xf32>
    %23 = vector.multi_reduction <add>, %22, %cst_11 [1, 2] : vector<1x16x16xf32> to vector<1xf32>
    %24 = vector.shape_cast %23 : vector<1xf32> to vector<1x1x1xf32>
    %25 = vector.extract %24[0, 0, 0] : f32 from vector<1x1x1xf32>
    %26 = vector.broadcast %25 : f32 to vector<1x1xf32>
    %c0_12 = arith.constant 0 : index
    %c0_13 = arith.constant 0 : index
    %c0_14 = arith.constant 0 : index
    %27 = vector.load %arg3[%c0_12, %c0_13, %c0_14] : memref<1x1x1xf32, #tpu.memory_space<vmem>>, vector<1x1x1xf32>
    %28 = vector.shape_cast %27 : vector<1x1x1xf32> to vector<1x1xf32>
    %29 = vector.shape_cast %26 : vector<1x1xf32> to vector<1x1x1xf32>
    tpu.vector_store %arg3[%c0_12, %c0_13, %c0_14], %29 {strides = array<i32>} : memref<1x1x1xf32, #tpu.memory_space<vmem>>, vector<1x1x1xf32>,
    return
  }
  func.func @transform_0(%arg0: i32) -> (i32, i32, i32) {
    %c0_i32 = arith.constant 0 : i32
    %c0_i32_0 = arith.constant 0 : i32
    %c0_i32_1 = arith.constant 0 : i32
    return %arg0, %c0_i32, %c0_i32_0 : i32, i32, i32
  }
  func.func @transform_1(%arg0: i32) -> (i32, i32, i32) {
    %c0_i32 = arith.constant 0 : i32
    %c0_i32_0 = arith.constant 0 : i32
    %c0_i32_1 = arith.constant 0 : i32
    return %arg0, %c0_i32, %c0_i32_0 : i32, i32, i32
  }
  func.func @transform_2(%arg0: i32) -> (i32, i32, i32) {
    %c0_i32 = arith.constant 0 : i32
    %c0_i32_0 = arith.constant 0 : i32
    %c0_i32_1 = arith.constant 0 : i32
    return %arg0, %c0_i32, %c0_i32_0 : i32, i32, i32
  }
}

</mosaic_0001>

<llo_original>
// kernel: tpu_custom_call.1
$region0: #{tpu_custom_call.1}
  #allocation0 [shape = 'u32[]', space=smem, size = 0x4, offset = 0x4, fixed_abs, tag = 'smem constant byte address 0x4 - core index']
  #allocation1 [shape = 'u32[144,128]{1,0:T(1,128)}', space=vmem, size = 0x12000, scoped, tag = 'internal scratch']
  #allocation2 [shape = 'f32[18,18]{1,0:T(8,128)}', space=vmem, size = 0x3000, scoped, tag = 'scratch operand']
  %s0 = inlined_call_operand.hbm [shape: f32[2,16,16], index: 0, kind: input, shape index: {}]
  %s1 = inlined_call_operand.hbm [shape: bf16[2,16,16], index: 1, kind: output, shape index: {0}]
  %s2 = inlined_call_operand.vmem [shape: f32[2,1,1], index: 2, kind: output, shape index: {1}]
  %3 = xla_tuple %s1, %s2
  %s4 = sld [smem:[#allocation0]]
  $region49: #{tpu_custom_call.1} parent=0
    _
  %s6 = ssub.s32 1, %s4
  %s7 = scalar_select 0, %s6, %s4
  $region1: #{tpu_custom_call.1} parent=0
    #allocation3 [shape = 'u8[16384]{0}', space=vmem, size = 0x4000, scoped, tag = 'input window, operand 0']
    #allocation4 [shape = 's32[2]{0}', space=sflag, size = 0x8, scoped, tag = 'scoped memory for tpu_custom_call.1']
    #allocation5 [shape = 's32[2]{0}', space=sflag, size = 0x8, scoped, tag = 'scoped memory for tpu_custom_call.1']
    #allocation6 [shape = 'u8[8192]{0}', space=vmem, size = 0x2000, scoped, tag = 'output window, operand 0']
    %8 = vsyncpa [#allocation4], 0
    %s9 = scalar_lea.sflag [#allocation4], 1
    %10 = vsyncpa %s9, 0
    %11 = vsyncpa [#allocation5], 0
    %s12 = scalar_lea.sflag [#allocation5], 1
    %13 = vsyncpa %s12, 0
    loop: start=0, step=1, limit=4
    $region2: #{tpu_custom_call.1} parent=1 // loop_pre_header
      _
    $region3: #{tpu_custom_call.1} parent=1 // loop_header
      %s15 = sphi 0, %s19
      %p16 = scmp.ge.s32.totalorder %s15, 4
      %s25 = sphi 0, %s27
      %s28 = sphi 0, %s25
      %s29 = sphi 0, %s28
      %s45 = sphi 0, %s29
      %s51 = sphi 0, %s53
      %s54 = sphi 0, %s51
      %s55 = sphi 0, %s54
      %s71 = sphi 0, %s55
      %s77 = sphi 0, %s79
      %s80 = sphi 0, %s77
      %s81 = sphi 0, %s80
      %s97 = sphi 0, %s81
    $region4: #{tpu_custom_call.1} parent=1 // loop_header_branch
      %18 = sbr.rel (%p16) target = $region8
    $region5: #{tpu_custom_call.1} parent=1 // loop_body
      %s20 = ssub.s32 %s15, 1
      %s21 = ssub.s32 %s15, 2
      %s22 = sadd.s32 %s15, 1
      %s23 = ssub.s32 %s15, %s22
      %p24 = scmp.eq.s32.totalorder %s23, 0
      %s26 = sadd.s32 %s25, 1
      %s27 = scalar_select %p24, %s25, %s26
      %p30 = pneg %p24
      %p31 = scmp.eq.s32.totalorder %s15, 1
      %p32 = por %p30, %p31
      %p33 = scmp.ne.s32.totalorder %s25, %s28
      %p34 = scmp.eq.s32.totalorder %s15, 0
      %p35 = por %p33, %p34
      %p36 = scmp.ne.s32.totalorder %s25, %s28
      %p37 = scmp.eq.s32.totalorder %s20, 1
      %p38 = por %p36, %p37
      %p39 = scmp.ne.s32.totalorder %s28, %s29
      %p40 = scmp.eq.s32.totalorder %s20, 0
      %p41 = por %p39, %p40
      %p42 = scmp.ne.s32.totalorder %s28, %s29
      %p43 = scmp.eq.s32.totalorder %s21, 1
      %p44 = por %p42, %p43
      %p46 = scmp.ne.s32.totalorder %s29, %s45
      %p47 = scmp.eq.s32.totalorder %s21, 0
      %p48 = por %p46, %p47
      %s49 = ssub.s32 %s15, %s22
      %p50 = scmp.eq.s32.totalorder %s49, 0
      %s52 = sadd.s32 %s51, 1
      %s53 = scalar_select %p50, %s51, %s52
      %p56 = pneg %p50
      %p57 = scmp.eq.s32.totalorder %s15, 1
      %p58 = por %p56, %p57
      %p59 = scmp.ne.s32.totalorder %s51, %s54
      %p60 = scmp.eq.s32.totalorder %s15, 0
      %p61 = por %p59, %p60
      %p62 = scmp.ne.s32.totalorder %s51, %s54
      %p63 = scmp.eq.s32.totalorder %s20, 1
      %p64 = por %p62, %p63
      %p65 = scmp.ne.s32.totalorder %s54, %s55
      %p66 = scmp.eq.s32.totalorder %s20, 0
      %p67 = por %p65, %p66
      %p68 = scmp.ne.s32.totalorder %s54, %s55
      %p69 = scmp.eq.s32.totalorder %s21, 1
      %p70 = por %p68, %p69
      %p72 = scmp.ne.s32.totalorder %s55, %s71
      %p73 = scmp.eq.s32.totalorder %s21, 0
      %p74 = por %p72, %p73
      %s75 = ssub.s32 %s15, %s22
      %p76 = scmp.eq.s32.totalorder %s75, 0
      %s78 = sadd.s32 %s77, 1
      %s79 = scalar_select %p76, %s77, %s78
      %p82 = pneg %p76
      %p83 = scmp.eq.s32.totalorder %s15, 1
      %p84 = por %p82, %p83
      %p85 = scmp.ne.s32.totalorder %s77, %s80
      %p86 = scmp.eq.s32.totalorder %s15, 0
      %p87 = por %p85, %p86
      %p88 = scmp.ne.s32.totalorder %s77, %s80
      %p89 = scmp.eq.s32.totalorder %s20, 1
      %p90 = por %p88, %p89
      %p91 = scmp.ne.s32.totalorder %s80, %s81
      %p92 = scmp.eq.s32.totalorder %s20, 0
      %p93 = por %p91, %p92
      %p94 = scmp.ne.s32.totalorder %s80, %s81
      %p95 = scmp.eq.s32.totalorder %s21, 1
      %p96 = por %p94, %p95
      %p98 = scmp.ne.s32.totalorder %s81, %s97
      %p99 = scmp.eq.s32.totalorder %s21, 0
      %p100 = por %p98, %p99
      %p101 = scmp.le.s32.totalorder 1, %s15
      %p102 = scmp.lt.s32.totalorder %s15, 3
      %p103 = pnand %p101, %p102
      %p104 = pneg %p103
      // Predicated region
      $region9: #{tpu_custom_call.1} parent=5 // pred_check
        _
      $region10: #{tpu_custom_call.1} parent=5 // pred_check_branch
        %106 = sbr.rel (%p103) target = $region12
      $region11: #{tpu_custom_call.1} parent=5 // pred_region
        %s107 = ssub.s32 %s15, 1
      $region12: #{tpu_custom_call.1} parent=5 // pred_fallthru
        _
      %p108 = scmp.lt.s32.totalorder %s15, 2
      // Predicated region
      $region13: #{tpu_custom_call.1} parent=5 // pred_check
        %p109 = pneg %p108
      $region14: #{tpu_custom_call.1} parent=5 // pred_check_branch
        %111 = sbr.rel (%p109) target = $region16
      $region15: #{tpu_custom_call.1} parent=5 // pred_region
        // Predicated region
        $region17: #{tpu_custom_call.1} parent=15 // pred_check
          %p112 = pneg %p35
        $region18: #{tpu_custom_call.1} parent=15 // pred_check_branch
          %114 = sbr.rel (%p112) target = $region20
        $region19: #{tpu_custom_call.1} parent=15 // pred_region
          %s115 = sand.u32 %s25, 1
          %s116 = scalar_lea.sflag [#allocation4], %s115
          %s117 = sand.u32 %s25, 1
          %s118 = smul.addr %s117, 16
          %s119 = scalar_lea.vmem [#allocation3], %s118
          %s121 = ssub.s32 256, 256
          %122 = vsyncadd %s116, %s121
          %s123 = smul.addr %s15, 2
          %s124 = smul.addr %s123, 128
          %s125 = scalar_lea.hbm %s0, %s124
          %s126 = sshll.u32 %s119, 4
          %s127 = int_to_ptr.vmem [resolvable:$true] %s126
          %132 = dma.hbm_to_vmem [thread:$0]  %s125, 256, %s127, %s116, 128, 128, 8
        $region20: #{tpu_custom_call.1} parent=15 // pred_fallthru
          _
      $region16: #{tpu_custom_call.1} parent=5 // pred_fallthru
        _
      %p133 = scmp.le.s32.totalorder 1, %s15
      %p134 = scmp.lt.s32.totalorder %s15, 3
      %p135 = pnand %p133, %p134
      %p136 = pneg %p135
      // Predicated region
      $region21: #{tpu_custom_call.1} parent=5 // pred_check
        _
      $region22: #{tpu_custom_call.1} parent=5 // pred_check_branch
        %138 = sbr.rel (%p135) target = $region24
      $region23: #{tpu_custom_call.1} parent=5 // pred_region
        %s139 = ssub.s32 %s15, 1
        %s140 = sand.u32 %s28, 1
        %s141 = scalar_lea.sflag [#allocation4], %s140
        %s142 = sand.u32 %s28, 1
        %s143 = smul.addr %s142, 16
        %s144 = scalar_lea.vmem [#allocation3], %s143
        // Predicated region
        $region25: #{tpu_custom_call.1} parent=23 // pred_check
          %p145 = pneg %p41
        $region26: #{tpu_custom_call.1} parent=23 // pred_check_branch
          %147 = sbr.rel (%p145) target = $region28
        $region27: #{tpu_custom_call.1} parent=23 // pred_region
          %148 = dma.done %s141, 256
        $region28: #{tpu_custom_call.1} parent=23 // pred_fallthru
          _
        %s149 = sand.u32 %s28, 1
        %s150 = scalar_lea.sflag [#allocation4], %s149
        %s151 = sand.u32 %s28, 1
        %s152 = smul.addr %s151, 16
        %s153 = scalar_lea.vmem [#allocation3], %s152
        %p154 = pneg %p41
        %p155 = pneg %p38
        %p156 = pneg %p67
        %p157 = pneg %p64
        %s158 = sand.u32 %s54, 1
        %s159 = scalar_lea.sflag [#allocation5], %s158
        %s160 = sand.u32 %s54, 1
        %s161 = smul.addr %s160, 8
        %s162 = scalar_lea.vmem [#allocation6], %s161
        %p163 = pneg %p93
        %p164 = pneg %p90
        %p165 = scmp.lt.s32.totalorder %s20, 1
        %s166 = scalar_select %p165, %s20, 1
        %s167 = scalar_lea.vmem %s2, %s166
        %p168 = scmp.lt.s32.totalorder %s20, 1
        %s169 = scalar_select %p168, %s20, 1
        %s170 = scalar_lea.vmem %s2, %s169
        %vm171 = vcmask 146432
        %172 = vst.msk [vmem:[#allocation2] sm:$0xff] %vm171, 0.0
        %173 = vst.msk [vmem:[#allocation2 + $0x8] sm:$0xff] %vm171, 0.0
        %vm174 = vcmask 140288
        %175 = vst.msk [vmem:[#allocation2 + $0x10] sm:$0x3] %vm174, 0.0
        %v176 = vld [vmem:[%s144] sm:$0xff]
        %v177 = vld [vmem:[%s144 + $0x8] sm:$0xff]
        %180 = vrot.lane.b32.xlu0 %v176, 1
        %v181 = vpop.permute.xlu0 %180
        %182 = vrot.lane.b32.xlu0 %v177, 1
        %v183 = vpop.permute.xlu0 %182
        %vm186 = vcmask 138248
        %187 = vst.msk [vmem:[#allocation2 + $0x1] sm:$0xff] %vm186, %v181
        %188 = vst.msk [vmem:[#allocation2 + $0x9] sm:$0xff] %vm186, %v183
        %v189 = vld [vmem:[#allocation2] sm:$0xff]
        %v190 = vld [vmem:[#allocation2 + $0x8] sm:$0xff]
        %v191 = vld [vmem:[#allocation2 + $0x10] sm:$0x3]
        %vm195 = vcmask 1046528
        %v196 = vrot.slane %v189, 1
        %v197 = vrot.slane %v190, 1
        %v198 = vsel %vm195, %v196, %v197
        %v199 = vrot.slane %v191, 1
        %v200 = vsel %vm195, %v197, %v199
        %v203 = vmax.f32 %v189, %v198
        %v204 = vmax.f32 %v190, %v200
        %vm205 = vcmask 1045504
        %v206 = vrot.slane %v189, 2
        %v207 = vrot.slane %v190, 2
        %v208 = vsel %vm205, %v206, %v207
        %v209 = vrot.slane %v191, 2
        %v210 = vsel %vm205, %v207, %v209
        %v213 = vmax.f32 %v203, %v208
        %v214 = vmax.f32 %v204, %v210
        %217 = vrot.lane.b32.xlu0 %v213, 127
        %v218 = vpop.permute.xlu0 %217
        %219 = vrot.lane.b32.xlu0 %v214, 127
        %v220 = vpop.permute.xlu0 %219
        %v223 = vmax.f32 %v213, %v218
        %v224 = vmax.f32 %v214, %v220
        %225 = vrot.lane.b32.xlu0 %v213, 126
        %v226 = vpop.permute.xlu0 %225
        %227 = vrot.lane.b32.xlu0 %v214, 126
        %v228 = vpop.permute.xlu0 %227
        %v231 = vmax.f32 %v223, %v226
        %v232 = vmax.f32 %v224, %v228
        %v233 = vsub.f32 1.0, %v231
        %v234 = vsub.f32 1.0, %v232
        %v235 = vpack.c.bf16 %v234, %v233
        %v237 = vunpack.c.l.b16 %v235
        %v238 = vunpack.c.h.b16 %v235
        %v239 = vpack.c.b16 %v237, %v237
        %v240 = vpack.c.b16 %v238, %v238
        %vm243 = vcmask 125952
        %244 = vst.msk [vmem:[%s162] sm:$0xf] %vm243, %v239
        %245 = vst.msk [vmem:[%s162 + $0x4] sm:$0xf] %vm243, %v240
        %vm246 = vcmask 130048
        %v247 = vsel %vm246, %v233, 0.0
        %v248 = vsel %vm246, %v234, 0.0
        %v249 = vadd.f32 %v247, %v248
        %250 = vadd.xlane.f32.xlu0 %v249
        %v251 = vpop.xlane.xlu0 %250
        %v252 = vrot.slane %v251, 4
        %v253 = vadd.f32 %v251, %v252
        %v254 = vrot.slane %v253, 2
        %v255 = vadd.f32 %v253, %v254
        %v256 = vrot.slane %v255, 1
        %v257 = vadd.f32 %v255, %v256
        %s258 = vtos %v257
        %v259 = vstv %s258
        %vm260 = vcmask 0
        %261 = vst.msk [vmem:[%s170] sm:$0x1] %vm260, %v259
        %s262 = sand.u32 %s54, 1
        %s263 = scalar_lea.sflag [#allocation5], %s262
        %s264 = sand.u32 %s54, 1
        %s265 = smul.addr %s264, 8
        %s266 = scalar_lea.vmem [#allocation6], %s265
        %p267 = scmp.lt.s32.totalorder %s20, 1
        %s268 = scalar_select %p267, %s20, 1
        %s269 = scalar_lea.vmem %s2, %s268
        // Predicated region
        $region29: #{tpu_custom_call.1} parent=23 // pred_check
          %p270 = pneg %p64
        $region30: #{tpu_custom_call.1} parent=23 // pred_check_branch
          %272 = sbr.rel (%p270) target = $region32
        $region31: #{tpu_custom_call.1} parent=23 // pred_region
          %s274 = ssub.s32 128, 128
          %275 = vsyncadd %s263, %s274
          %s276 = smul.addr %s20, 2
          %s277 = smul.addr %s276, 64
          %s278 = scalar_lea.hbm %s1, %s277
          %s279 = sshll.u32 %s266, 4
          %s280 = int_to_ptr.vmem [resolvable:$true] %s279
          %285 = dma.vmem_to_hbm [thread:$0]  %s280, 128, %s278, %s263, 64, 64, 4
        $region32: #{tpu_custom_call.1} parent=23 // pred_fallthru
          _
        // Predicated region
        $region33: #{tpu_custom_call.1} parent=23 // pred_check
          %p286 = pneg %p90
        $region34: #{tpu_custom_call.1} parent=23 // pred_check_branch
          %288 = sbr.rel (%p286) target = $region36
        $region35: #{tpu_custom_call.1} parent=23 // pred_region
          _
        $region36: #{tpu_custom_call.1} parent=23 // pred_fallthru
          _
      $region24: #{tpu_custom_call.1} parent=5 // pred_fallthru
        _
      %p289 = scmp.le.s32.totalorder 2, %s15
      // Predicated region
      $region37: #{tpu_custom_call.1} parent=5 // pred_check
        %p290 = pneg %p289
      $region38: #{tpu_custom_call.1} parent=5 // pred_check_branch
        %292 = sbr.rel (%p290) target = $region40
      $region39: #{tpu_custom_call.1} parent=5 // pred_region
        %s293 = ssub.s32 %s15, 2
        // Predicated region
        $region41: #{tpu_custom_call.1} parent=39 // pred_check
          %p294 = pneg %p70
        $region42: #{tpu_custom_call.1} parent=39 // pred_check_branch
          %296 = sbr.rel (%p294) target = $region44
        $region43: #{tpu_custom_call.1} parent=39 // pred_region
          %s297 = sand.u32 %s55, 1
          %s298 = scalar_lea.sflag [#allocation5], %s297
          %s299 = sand.u32 %s55, 1
          %s300 = smul.addr %s299, 8
          %s301 = scalar_lea.vmem [#allocation6], %s300
          %302 = dma.done %s298, 128
        $region44: #{tpu_custom_call.1} parent=39 // pred_fallthru
          _
        // Predicated region
        $region45: #{tpu_custom_call.1} parent=39 // pred_check
          %p303 = pneg %p96
        $region46: #{tpu_custom_call.1} parent=39 // pred_check_branch
          %305 = sbr.rel (%p303) target = $region48
        $region47: #{tpu_custom_call.1} parent=39 // pred_region
          %p306 = scmp.lt.s32.totalorder %s21, 1
          %s307 = scalar_select %p306, %s21, 1
          %s308 = scalar_lea.vmem %s2, %s307
        $region48: #{tpu_custom_call.1} parent=39 // pred_fallthru
          _
      $region40: #{tpu_custom_call.1} parent=5 // pred_fallthru
        _
    $region6: #{tpu_custom_call.1} parent=1 // loop_footer
      %s19 = sadd.s32 1, %s15
    $region7: #{tpu_custom_call.1} parent=1 // loop_footer_branch
      %14 = sbr.rel target = $region3
    $region8: #{tpu_custom_call.1} parent=1 // loop_exit
      _
    %309 = vsyncpa [#allocation4], 1
    %s310 = scalar_lea.sflag [#allocation4], 1
    %311 = vsyncpa %s310, 1
    %312 = vsyncpa [#allocation5], 1
    %s313 = scalar_lea.sflag [#allocation5], 1
    %314 = vsyncpa %s313, 1

</llo_original>
